<compile_context>
chip_gen: v5e
topology: v5e:2x2
jax: 0.10.0
libtpu: 0.0.40
codegen_flags: <defaults>
</compile_context>

<pallas_src>
import functools

import jax
import jax.numpy as jnp
from jax.experimental import pallas as pl
from jax.experimental.pallas import tpu as pltpu

# Conservative VMEM sizing: block budget must fit v7x's 64 MiB per-TC VMEM
# as well as v5e/v6e, with headroom for gamma/beta + compiler scratch.
_VMEM_BLOCK_BUDGET = 40 * 1024 * 1024   # bytes available for tiled streams
_VMEM_LIMIT_BYTES = 48 * 1024 * 1024    # scoped VMEM limit handed to Mosaic


def _round_up(x: int, m: int) -> int:
    return (x + m - 1) // m * m


def _choose_tile_rows(rows: int, hidden: int, itemsize: int) -> int:
    """Largest sublane-aligned row tile that fits the VMEM budget.

    3 streams (X, Y, out) x 2 pipeline buffers = 6 copies of each row tile.
    Keeps >= ~8 grid steps when the problem is big enough so the parallel
    grid axis still shards across v7x's two TensorCores.
    """
    sub = max(8, 32 // itemsize)            # 8 (f32), 16 (bf16), 32 (8-bit)
    bytes_per_row = 6 * hidden * itemsize
    cap = max(sub, _VMEM_BLOCK_BUDGET // max(bytes_per_row, 1))
    cap = min(cap, 1024)
    if rows >= 8 * sub:
        # Leave at least ~8 grid steps for megacore sharding / pipelining.
        cap = min(cap, _round_up(pl.cdiv(rows, 8), sub))
    cap = min(cap, _round_up(rows, sub))    # never exceed (padded) row count
    return max(sub, (cap // sub) * sub)


def _addnorm_kernel(seed_ref, x_ref, y_ref, gamma_ref, beta_ref, o_ref,
                    *, p_drop: float, eps: float, training: bool):
    """One grid step processes a (tile_rows, hidden) slab."""
    x = x_ref[...].astype(jnp.float32)
    y = y_ref[...].astype(jnp.float32)

    # --- dropout(Y) ----------------------------------------------------
    if training and p_drop > 0.0:
        # Per-tile seed so every grid step draws independent bits.
        # TODO(synk): mix in a per-call counter if reusing nearby seeds across
        # many calls (seeds differing by < grid size would correlate streams).
        pltpu.prng_seed(seed_ref[0] + pl.program_id(0))
        bits = pltpu.bitcast(pltpu.prng_random_bits(y.shape), jnp.uint32)
        thresh = jnp.uint32(min(int(round(p_drop * 2.0 ** 32)), 2 ** 32 - 1))
        keep = bits >= thresh                     # P(keep) = 1 - p_drop
        y = jnp.where(keep, y * jnp.float32(1.0 / (1.0 - p_drop)),
                      jnp.float32(0.0))
    # eval mode: dropout is identity (matches nn.Dropout.eval()).

    # --- residual add --------------------------------------------------
    z = x + y

    # --- LayerNorm over the last (hidden) axis (one-pass stats) --------
    inv_h = jnp.float32(1.0 / z.shape[-1])
    mean = jnp.sum(z, axis=-1, keepdims=True) * inv_h
    mean_sq = jnp.sum(z * z, axis=-1, keepdims=True) * inv_h
    var = mean_sq - mean * mean
    inv = jax.lax.rsqrt(var + jnp.float32(eps))

    gamma = gamma_ref[...].astype(jnp.float32)    # (1, hidden)
    beta = beta_ref[...].astype(jnp.float32)      # (1, hidden)
    o_ref[...] = ((z - mean) * inv * gamma + beta).astype(o_ref.dtype)


def add_norm(x, y, gamma, beta, *, dropout: float = 0.0, eps: float = 1e-5,
             training: bool = False, seed: int = 0, tile_rows: int | None = None):
    """AddNorm forward: LayerNorm(dropout(Y) + X), normalized over last dim."""
    assert x.shape == y.shape
    orig_shape = x.shape
    hidden = orig_shape[-1]
    rows = 1
    for d in orig_shape[:-1]:
        rows *= d

    itemsize = jnp.dtype(x.dtype).itemsize
    if tile_rows is None:
        tile_rows = _choose_tile_rows(rows, hidden, itemsize)

    padded_rows = _round_up(rows, tile_rows)
    grid = (padded_rows // tile_rows,)

    x2 = x.reshape(rows, hidden)
    y2 = y.reshape(rows, hidden)
    if padded_rows != rows:
        pad = ((0, padded_rows - rows), (0, 0))
        x2 = jnp.pad(x2, pad)
        y2 = jnp.pad(y2, pad)
    gamma2 = gamma.reshape(1, hidden)
    beta2 = beta.reshape(1, hidden)

    kernel = functools.partial(_addnorm_kernel, p_drop=float(dropout),
                               eps=float(eps), training=training)

    seed_arr = jnp.array([seed], dtype=jnp.int32)

    out_itemsize = itemsize
    cost = pl.CostEstimate(
        flops=8 * rows * hidden,
        transcendentals=rows,
        bytes_accessed=(2 * rows * hidden * itemsize            # X, Y in
                        + rows * hidden * out_itemsize          # out
                        + 2 * hidden * jnp.dtype(gamma.dtype).itemsize),
    )

    out2 = pl.pallas_call(
        kernel,
        out_shape=jax.ShapeDtypeStruct((padded_rows, hidden), x.dtype),
        grid_spec=pltpu.PrefetchScalarGridSpec(
            num_scalar_prefetch=1,
            grid=grid,
            in_specs=[
                pl.BlockSpec((tile_rows, hidden), lambda i, seed: (i, 0)),  # X
                pl.BlockSpec((tile_rows, hidden), lambda i, seed: (i, 0)),  # Y
                pl.BlockSpec((1, hidden), lambda i, seed: (0, 0)),          # gamma
                pl.BlockSpec((1, hidden), lambda i, seed: (0, 0)),          # beta
            ],
            out_specs=pl.BlockSpec((tile_rows, hidden), lambda i, seed: (i, 0)),
        ),
        compiler_params=pltpu.CompilerParams(
            dimension_semantics=("parallel",),
            vmem_limit_bytes=_VMEM_LIMIT_BYTES),
        cost_estimate=cost,
    )(seed_arr, x2, y2, gamma2, beta2)

    if padded_rows != rows:
        out2 = out2[:rows]
    return out2.reshape(orig_shape)


def _reference(x, y, gamma, beta, eps=1e-5):
    z = y + x
    mean = jnp.mean(z, axis=-1, keepdims=True)
    var = jnp.mean((z - mean) ** 2, axis=-1, keepdims=True)
    return (z - mean) / jnp.sqrt(var + eps) * gamma + beta


if __name__ == "__main__":
    # Shapes implied by the forward: X, Y are [batch, seq, hidden],
    # normalized_shape = hidden.  (hidden=32 is a test-only toy shape; real
    # transformer hiddens are >= 128 and lane-dense.)
    dropout_p = 0.1   # ctor arg; forward is run in eval mode here, where
                      # nn.Dropout is the identity, so the result exactly
                      # matches PyTorch eval().

    key = jax.random.PRNGKey(0)

    # nn.LayerNorm default init: weight=1, bias=0 (deterministic).
    hidden = 32
    gamma = jnp.ones((hidden,), dtype=jnp.float32)
    beta = jnp.zeros((hidden,), dtype=jnp.float32)

    # Case 1: rows divisible by the chosen tile.
    kx, ky, kx2, ky2 = jax.random.split(key, 4)
    X1 = jax.random.normal(kx, (2, 8, hidden), dtype=jnp.float32)
    Y1 = jax.random.normal(ky, (2, 8, hidden), dtype=jnp.float32)
    out1 = jax.block_until_ready(
        add_norm(X1, Y1, gamma, beta, dropout=dropout_p, training=False))
    ref1 = _reference(X1, Y1, gamma, beta)
    assert jnp.allclose(out1, ref1, atol=1e-5, rtol=1e-5), "mismatch (case 1)"

    # Case 2: rows NOT divisible by the tile (exercises the padding path).
    X2 = jax.random.normal(kx2, (3, 5, hidden), dtype=jnp.float32)
    Y2 = jax.random.normal(ky2, (3, 5, hidden), dtype=jnp.float32)
    out2 = jax.block_until_ready(
        add_norm(X2, Y2, gamma, beta, dropout=dropout_p, training=False))
    ref2 = _reference(X2, Y2, gamma, beta)
    assert jnp.allclose(out2, ref2, atol=1e-5, rtol=1e-5), "mismatch (case 2)"

    print("KERNEL_OK")
</pallas_src>

<mosaic_0001>
module attributes {stable_mosaic.version = 11 : i64} {
  func.func @_addnorm_kernel(%arg0: i32, %arg1: memref<1xi32, #tpu.memory_space<smem>>, %arg2: memref<16x32xf32, #tpu.memory_space<vmem>>, %arg3: memref<16x32xf32, #tpu.memory_space<vmem>>, %arg4: memref<1x32xf32, #tpu.memory_space<vmem>>, %arg5: memref<1x32xf32, #tpu.memory_space<vmem>>, %arg6: memref<16x32xf32, #tpu.memory_space<vmem>>) attributes {dimension_semantics = [#tpu.dimension_semantics<parallel>], iteration_bounds = array<i64: 1>, scalar_prefetch = 1 : i64, scratch_operands = 0 : i64, tpu.core_type = #tpu.core_type<tc>, window_params = [{transform_indices = @transform_0, window_bounds = array<i64: 16, 32>}, {transform_indices = @transform_1, window_bounds = array<i64: 16, 32>}, {pipeline_mode = #tpu.pipeline_mode<synchronous>, transform_indices = @transform_2, window_bounds = array<i64: 1, 32>}, {pipeline_mode = #tpu.pipeline_mode<synchronous>, transform_indices = @transform_3, window_bounds = array<i64: 1, 32>}, {transform_indices = @transform_4, window_bounds = array<i64: 16, 32>}]} {
    %c0 = arith.constant 0 : index
    %c0_0 = arith.constant 0 : index
    %0 = vector.load %arg2[%c0, %c0_0] : memref<16x32xf32, #tpu.memory_space<vmem>>, vector<16x32xf32>
    %c0_1 = arith.constant 0 : index
    %c0_2 = arith.constant 0 : index
    %1 = vector.load %arg3[%c0_1, %c0_2] : memref<16x32xf32, #tpu.memory_space<vmem>>, vector<16x32xf32>
    %2 = arith.addf %0, %1 : vector<16x32xf32>
    %cst = arith.constant dense<0.000000e+00> : vector<16xf32>
    %3 = vector.multi_reduction <add>, %2, %cst [1] : vector<16x32xf32> to vector<16xf32>
    %4 = vector.shape_cast %3 : vector<16xf32> to vector<16x1xf32>
    %cst_3 = arith.constant 3.125000e-02 : f32
    %5 = vector.broadcast %cst_3 : f32 to vector<16x1xf32>
    %6 = arith.mulf %4, %5 : vector<16x1xf32>
    %7 = arith.mulf %2, %2 : vector<16x32xf32>
    %cst_4 = arith.constant dense<0.000000e+00> : vector<16xf32>
    %8 = vector.multi_reduction <add>, %7, %cst_4 [1] : vector<16x32xf32> to vector<16xf32>
    %9 = vector.shape_cast %8 : vector<16xf32> to vector<16x1xf32>
    %cst_5 = arith.constant 3.125000e-02 : f32
    %10 = vector.broadcast %cst_5 : f32 to vector<16x1xf32>
    %11 = arith.mulf %9, %10 : vector<16x1xf32>
    %12 = arith.mulf %6, %6 : vector<16x1xf32>
    %13 = arith.subf %11, %12 : vector<16x1xf32>
    %cst_6 = arith.constant 9.99999974E-6 : f32
    %14 = vector.broadcast %cst_6 : f32 to vector<16x1xf32>
    %15 = arith.addf %13, %14 : vector<16x1xf32>
    %16 = math.rsqrt %15 : vector<16x1xf32>
    %c0_7 = arith.constant 0 : index
    %c0_8 = arith.constant 0 : index
    %17 = vector.load %arg4[%c0_7, %c0_8] : memref<1x32xf32, #tpu.memory_space<vmem>>, vector<1x32xf32>
    %c0_9 = arith.constant 0 : index
    %c0_10 = arith.constant 0 : index
    %18 = vector.load %arg5[%c0_9, %c0_10] : memref<1x32xf32, #tpu.memory_space<vmem>>, vector<1x32xf32>
    %19 = vector.broadcast %6 : vector<16x1xf32> to vector<16x32xf32>
    %20 = arith.subf %2, %19 : vector<16x32xf32>
    %21 = vector.broadcast %16 : vector<16x1xf32> to vector<16x32xf32>
    %22 = arith.mulf %20, %21 : vector<16x32xf32>
    %23 = vector.broadcast %17 : vector<1x32xf32> to vector<16x32xf32>
    %24 = arith.mulf %22, %23 : vector<16x32xf32>
    %25 = vector.broadcast %18 : vector<1x32xf32> to vector<16x32xf32>
    %26 = arith.addf %24, %25 : vector<16x32xf32>
    %c0_11 = arith.constant 0 : index
    %c0_12 = arith.constant 0 : index
    %27 = vector.load %arg6[%c0_11, %c0_12] : memref<16x32xf32, #tpu.memory_space<vmem>>, vector<16x32xf32>
    tpu.vector_store %arg6[%c0_11, %c0_12], %26 {strides = array<i32>} : memref<16x32xf32, #tpu.memory_space<vmem>>, vector<16x32xf32>,
    return
  }
  func.func @transform_0(%arg0: i32, %arg1: memref<1xi32, #tpu.memory_space<smem>>) -> (i32, i32) {
    %c0_i32 = arith.constant 0 : i32
    %c0_i32_0 = arith.constant 0 : i32
    return %arg0, %c0_i32 : i32, i32
  }
  func.func @transform_1(%arg0: i32, %arg1: memref<1xi32, #tpu.memory_space<smem>>) -> (i32, i32) {
    %c0_i32 = arith.constant 0 : i32
    %c0_i32_0 = arith.constant 0 : i32
    return %arg0, %c0_i32 : i32, i32
  }
  func.func @transform_2(%arg0: i32, %arg1: memref<1xi32, #tpu.memory_space<smem>>) -> (i32, i32) {
    %c0_i32 = arith.constant 0 : i32
    %c0_i32_0 = arith.constant 0 : i32
    %c0_i32_1 = arith.constant 0 : i32
    return %c0_i32, %c0_i32_0 : i32, i32
  }
  func.func @transform_3(%arg0: i32, %arg1: memref<1xi32, #tpu.memory_space<smem>>) -> (i32, i32) {
    %c0_i32 = arith.constant 0 : i32
    %c0_i32_0 = arith.constant 0 : i32
    %c0_i32_1 = arith.constant 0 : i32
    return %c0_i32, %c0_i32_0 : i32, i32
  }
  func.func @transform_4(%arg0: i32, %arg1: memref<1xi32, #tpu.memory_space<smem>>) -> (i32, i32) {
    %c0_i32 = arith.constant 0 : i32
    %c0_i32_0 = arith.constant 0 : i32
    return %arg0, %c0_i32 : i32, i32
  }
}

</mosaic_0001>

<llo_original>
// kernel: tpu_custom_call.1
$region0: #{tpu_custom_call.1}
  #allocation0 [shape = 'u32[]', space=smem, size = 0x4, offset = 0x4, fixed_abs, tag = 'smem constant byte address 0x4 - core index']
  #allocation1 [shape = 'u32[72,128]{1,0:T(1,128)}', space=vmem, size = 0x9000, scoped, tag = 'internal scratch']
  #allocation2 [shape = 's32[1]{0}', space=sflag, size = 0x4, scoped, tag = 'scoped memory for tpu_custom_call.1']
  #allocation3 [shape = 's32[1]{0:T(128)S(6)}', space=smem, size = 0x200, scoped, tag = 'prefetched SMEM operand 0']
  %s0 = inlined_call_operand.<no memory space> [shape: s32[1], index: 0, kind: input, shape index: {}]
  %s1 = inlined_call_operand.hbm [shape: f32[16,32], index: 1, kind: input, shape index: {}]
  %s2 = inlined_call_operand.hbm [shape: f32[16,32], index: 2, kind: input, shape index: {}]
  %s3 = inlined_call_operand.vmem [shape: f32[1,32], index: 3, kind: input, shape index: {}]
  %s4 = inlined_call_operand.vmem [shape: f32[1,32], index: 4, kind: input, shape index: {}]
  %s5 = inlined_call_operand.hbm [shape: f32[16,32], index: 5, kind: output, shape index: {}]
  %s6 = sld [smem:[#allocation0]]
  $region34: #{tpu_custom_call.1} parent=0
    _
  %s8 = ssub.s32 1, %s6
  %s9 = scalar_select 0, %s8, %s6
  %10 = sst [smem:[#allocation3]] %s0
  $region1: #{tpu_custom_call.1} parent=0
    #allocation4 [shape = 'u8[8192]{0}', space=vmem, size = 0x2000, scoped, tag = 'input window, operand 1, single buffered']
    #allocation5 [shape = 's32[1]{0}', space=sflag, size = 0x4, scoped, tag = 'scoped memory for tpu_custom_call.1']
    #allocation6 [shape = 's32[1]{0}', space=sflag, size = 0x4, scoped, tag = 'scoped memory for tpu_custom_call.1']
    #allocation7 [shape = 'u8[8192]{0}', space=vmem, size = 0x2000, scoped, tag = 'input window, operand 2, single buffered']
    #allocation8 [shape = 's32[1]{0}', space=sflag, size = 0x4, scoped, tag = 'scoped memory for tpu_custom_call.1']
    #allocation9 [shape = 'u8[8192]{0}', space=vmem, size = 0x2000, scoped, tag = 'output window, operand 0, single buffered']
    %11 = vsyncpa [#allocation5], 0
    %12 = vsyncpa [#allocation8], 0
    %13 = vsyncpa [#allocation6], 0
    // Predicated region
    $region2: #{tpu_custom_call.1} parent=1 // pred_check
      _
    $region3: #{tpu_custom_call.1} parent=1 // pred_check_branch
      %15 = sbr.rel (0) target = $region5
    $region4: #{tpu_custom_call.1} parent=1 // pred_region
      %17 = vsyncadd [#allocation5], 0
      %s18 = sshll.u32 %s1, 4
      %s19 = int_to_ptr.hbm [resolvable:$true] %s18
      %s20 = sshll.u32 [#allocation4], 4
      %s21 = int_to_ptr.vmem [resolvable:$true] %s20
      %26 = dma.hbm_to_vmem [thread:$0]  %s19, 256, %s21, [#allocation5], 128, 128, 8
    $region5: #{tpu_custom_call.1} parent=1 // pred_fallthru
      _
    // Predicated region
    $region6: #{tpu_custom_call.1} parent=1 // pred_check
      _
    $region7: #{tpu_custom_call.1} parent=1 // pred_check_branch
      %28 = sbr.rel (0) target = $region9
    $region8: #{tpu_custom_call.1} parent=1 // pred_region
      %30 = vsyncadd [#allocation8], 0
      %s31 = sshll.u32 %s2, 4
      %s32 = int_to_ptr.hbm [resolvable:$true] %s31
      %s33 = sshll.u32 [#allocation7], 4
      %s34 = int_to_ptr.vmem [resolvable:$true] %s33
      %39 = dma.hbm_to_vmem [thread:$0]  %s32, 256, %s34, [#allocation8], 128, 128, 8
    $region9: #{tpu_custom_call.1} parent=1 // pred_fallthru
      _
    // Predicated region
    $region10: #{tpu_custom_call.1} parent=1 // pred_check
      _
    $region11: #{tpu_custom_call.1} parent=1 // pred_check_branch
      %41 = sbr.rel (0) target = $region13
    $region12: #{tpu_custom_call.1} parent=1 // pred_region
      _
    $region13: #{tpu_custom_call.1} parent=1 // pred_fallthru
      _
    // Predicated region
    $region14: #{tpu_custom_call.1} parent=1 // pred_check
      _
    $region15: #{tpu_custom_call.1} parent=1 // pred_check_branch
      %43 = sbr.rel (0) target = $region17
    $region16: #{tpu_custom_call.1} parent=1 // pred_region
      _
    $region17: #{tpu_custom_call.1} parent=1 // pred_fallthru
      _
    // Predicated region
    $region18: #{tpu_custom_call.1} parent=1 // pred_check
      _
    $region19: #{tpu_custom_call.1} parent=1 // pred_check_branch
      %45 = sbr.rel (0) target = $region21
    $region20: #{tpu_custom_call.1} parent=1 // pred_region
      %47 = dma.done [#allocation5], 256
    $region21: #{tpu_custom_call.1} parent=1 // pred_fallthru
      _
    // Predicated region
    $region22: #{tpu_custom_call.1} parent=1 // pred_check
      _
    $region23: #{tpu_custom_call.1} parent=1 // pred_check_branch
      %49 = sbr.rel (0) target = $region25
    $region24: #{tpu_custom_call.1} parent=1 // pred_region
      %51 = dma.done [#allocation8], 256
    $region25: #{tpu_custom_call.1} parent=1 // pred_fallthru
      _
    %v52 = vld [vmem:[#allocation4] sm:$0xff]
    %v53 = vld [vmem:[#allocation4 + $0x8] sm:$0xff]
    %v54 = vld [vmem:[#allocation7] sm:$0xff]
    %v55 = vld [vmem:[#allocation7 + $0x8] sm:$0xff]
    %v56 = vadd.f32 %v52, %v54
    %v57 = vadd.f32 %v53, %v55
    %vm58 = vcmask 261120
    %v59 = vsel %vm58, %v56, 0.0
    %60 = vadd.xlane.f32.xlu0 %v59
    %v61 = vpop.xlane.xlu0 %60
    %v62 = vsel %vm58, %v57, 0.0
    %63 = vadd.xlane.f32.xlu0 %v62
    %v64 = vpop.xlane.xlu0 %63
    %v65 = vmul.f32 %v61, 0.03125
    %v66 = vmul.f32 %v64, 0.03125
    %v67 = vmul.f32 %v56, %v56
    %v68 = vmul.f32 %v57, %v57
    %v69 = vsel %vm58, %v67, 0.0
    %70 = vadd.xlane.f32.xlu0 %v69
    %v71 = vpop.xlane.xlu0 %70
    %v72 = vsel %vm58, %v68, 0.0
    %73 = vadd.xlane.f32.xlu0 %v72
    %v74 = vpop.xlane.xlu0 %73
    %v75 = vmul.f32 %v71, 0.03125
    %v76 = vmul.f32 %v74, 0.03125
    %v77 = vmul.f32 %v65, %v65
    %v78 = vmul.f32 %v66, %v66
    %v79 = vsub.f32 %v75, %v77
    %v80 = vsub.f32 %v76, %v78
    %v81 = vadd.f32 %v79, 1e-05
    %v82 = vadd.f32 %v80, 1e-05
    %v83 = vrsqrt.pop %v81
    %v84 = vmul.f32 %v83, %v81
    %v85 = vmul.f32 %v84, %v83
    %v86 = vmul.f32 0.5, %v85
    %v87 = vsub.f32 1.5, %v86
    %v88 = vmul.f32 %v83, %v87
    %vm89 = vweird.f32 %v81
    %vm90 = vweird.f32 %v83
    %vm91 = vmor %vm89, %vm90
    %v92 = vsel %vm91, %v83, %v88
    %v93 = vrsqrt.pop %v82
    %v94 = vmul.f32 %v93, %v82
    %v95 = vmul.f32 %v94, %v93
    %v96 = vmul.f32 0.5, %v95
    %v97 = vsub.f32 1.5, %v96
    %v98 = vmul.f32 %v93, %v97
    %vm99 = vweird.f32 %v82
    %vm100 = vweird.f32 %v93
    %vm101 = vmor %vm99, %vm100
    %v102 = vsel %vm101, %v93, %v98
    %v103 = vld [vmem:[%s3] sm:$0x1]
    %v104 = vld [vmem:[%s4] sm:$0x1]
    %v105 = vsub.f32 %v56, %v65
    %v106 = vsub.f32 %v57, %v66
    %v107 = vmul.f32 %v105, %v92
    %v108 = vmul.f32 %v106, %v102
    %v110 = vperm.slane %v103, 0
    %v112 = vmul.f32 %v107, %v110
    %v113 = vmul.f32 %v108, %v110
    %v115 = vperm.slane %v104, 0
    %v117 = vadd.f32 %v112, %v115
    %v118 = vadd.f32 %v113, %v115
    %119 = vst.msk [vmem:[#allocation9] sm:$0xff] %vm58, %v117
    %120 = vst.msk [vmem:[#allocation9 + $0x8] sm:$0xff] %vm58, %v118
    // Predicated region
    $region26: #{tpu_custom_call.1} parent=1 // pred_check
      _
    $region27: #{tpu_custom_call.1} parent=1 // pred_check_branch
      %122 = sbr.rel (0) target = $region29
    $region28: #{tpu_custom_call.1} parent=1 // pred_region
      %124 = vsyncadd [#allocation6], 0
      %s125 = sshll.u32 [#allocation9], 4
      %s126 = int_to_ptr.vmem [resolvable:$true] %s125
      %s127 = sshll.u32 %s5, 4
      %s128 = int_to_ptr.hbm [resolvable:$true] %s127
      %133 = dma.vmem_to_hbm [thread:$0]  %s126, 256, %s128, [#allocation6], 128, 128, 8
    $region29: #{tpu_custom_call.1} parent=1 // pred_fallthru
      _
    // Predicated region
    $region30: #{tpu_custom_call.1} parent=1 // pred_check
      _
    $region31: #{tpu_custom_call.1} parent=1 // pred_check_branch
      %135 = sbr.rel (0) target = $region33
    $region32: #{tpu_custom_call.1} parent=1 // pred_region
      %137 = dma.done [#allocation6], 256
    $region33: #{tpu_custom_call.1} parent=1 // pred_fallthru
      _
    %138 = vsyncpa [#allocation5], 1
    %139 = vsyncpa [#allocation8], 1
    %140 = vsyncpa [#allocation6], 1

</llo_original>
